<compile_context>
chip_gen: v7x
topology: tpu7x:2x2x1
jax: 0.10.0
libtpu: 0.0.40
codegen_flags: <defaults>
</compile_context>

<pallas_src>
import functools

import jax
import jax.numpy as jnp
from jax import lax
from jax.experimental import pallas as pl
from jax.experimental.pallas import tpu as pltpu


def _round_up(x, m):
    return ((x + m - 1) // m) * m


def _embed_kernel(tok_ref, emb_ref, pos_ref, out_ref, *, chunk, s_pad):
    """One grid step: gather `chunk` vocab rows, add the position slab.

    tok_ref : SMEM (B*S_pad,) int32   -- scalar-prefetched flat token ids
    emb_ref : VMEM (n_vocab, E)       -- whole vocab table, resident
    pos_ref : VMEM (chunk, E)         -- dense position slab for this chunk
    out_ref : VMEM (chunk, E)         -- dense output tile (batch dim squeezed)
    """
    b = pl.program_id(0)
    j = pl.program_id(1)
    base = b * s_pad + j * chunk          # flat index of first token in tile
    n_groups = chunk // 8                 # static (chunk is compile-time)

    def emit_group(g):
        start = pl.multiple_of(g * 8, 8)
        rows = []
        for r in range(8):
            tok = tok_ref[base + start + r]              # SMEM scalar read
            rows.append(emb_ref[pl.ds(tok, 1), :])       # (1, E) dyn sublane slice
        tile = jnp.concatenate(rows, axis=0)             # (8, E)
        # One dense (8, E) add + store per group.
        out_ref[pl.ds(start, 8), :] = tile + pos_ref[pl.ds(start, 8), :]

    if n_groups <= 8:
        # Small chunk: fully static unroll (static slice offsets, max LLO view).
        for g in range(n_groups):
            emit_group(g)
    else:
        # Large chunk: bounded code size / vreg pressure; 8-row body stays
        # unrolled inside each iteration.
        def body(g, carry):
            emit_group(g)
            return carry
        lax.fori_loop(0, n_groups, body, 0)


def clip_embedding_forward(tokens, token_embedding, position_embedding, *,
                           chunk=None):
    """tokens: (B, S) int32
    token_embedding: (n_vocab, E)
    position_embedding: (n_tokens, E), with S == n_tokens
    returns: (B, S, E)  (== token_embedding[tokens] + position_embedding)
    """
    B, S = tokens.shape
    n_vocab, E = token_embedding.shape
    n_tokens, E2 = position_embedding.shape
    assert E == E2 and S == n_tokens

    if chunk is None:
        # Up to 512 tokens per grid step (multiple of 8) to amortize the
        # ~600-cycle per-step overhead; capped by the (padded) sequence.
        chunk = min(512, _round_up(S, 8))
    assert chunk % 8 == 0 and chunk >= 8
    num_chunks = pl.cdiv(S, chunk)
    s_pad = num_chunks * chunk            # chunk divides s_pad by construction

    tok = tokens.astype(jnp.int32)
    pos = position_embedding
    if s_pad != S:
        # Pad with token id 0 (valid row); padded outputs sliced off below.
        tok = jnp.pad(tok, ((0, 0), (0, s_pad - S)))
        pos = jnp.pad(pos, ((0, s_pad - S), (0, 0)))
    flat_tok = tok.reshape(-1)

    kernel = functools.partial(_embed_kernel, chunk=chunk, s_pad=s_pad)

    # Vocab table: constant index_map -> DMA'd to VMEM once, stays resident.
    emb_spec = pl.BlockSpec((n_vocab, E), lambda b, j, t: (0, 0))
    # Position slab: dense tile per chunk index (no per-token gather).
    pos_spec = pl.BlockSpec((chunk, E), lambda b, j, t: (j, 0))
    # Output written directly as (B, S_pad, E); leading batch dim squeezed.
    out_spec = pl.BlockSpec((None, chunk, E), lambda b, j, t: (b, j, 0))

    # VMEM budget: resident table (budget 2x for default double-buffering)
    # + double-buffered pos + out tiles, with headroom. Only raise the scoped
    # limit when the default (32 MiB) would not suffice.
    itemsize = jnp.dtype(token_embedding.dtype).itemsize
    need = (2 * n_vocab * E + 4 * chunk * E) * itemsize + (2 << 20)
    cparams = {"dimension_semantics": ("parallel", "parallel")}
    if need > (32 << 20):
        cparams["vmem_limit_bytes"] = int(min(need, 100 << 20))

    out = pl.pallas_call(
        kernel,
        out_shape=jax.ShapeDtypeStruct((B, s_pad, E), token_embedding.dtype),
        grid_spec=pltpu.PrefetchScalarGridSpec(
            num_scalar_prefetch=1,
            grid=(B, num_chunks),
            in_specs=[emb_spec, pos_spec],
            out_specs=out_spec,
        ),
        compiler_params=pltpu.CompilerParams(**cparams),
    )(flat_tok, token_embedding, pos)

    if s_pad != S:
        out = out[:, :S, :]
    return out


if __name__ == "__main__":
    # Small shapes consistent with the module: vocab=64, embed=128, seq=8, batch=2.
    n_vocab, n_embed, n_tokens = 64, 128, 8
    batch = 2

    key = jax.random.PRNGKey(0)
    k_tok, k_emb, k_pos = jax.random.split(key, 3)

    tokens = jax.random.randint(k_tok, (batch, n_tokens), 0, n_vocab,
                                dtype=jnp.int32)
    token_embedding = jax.random.normal(k_emb, (n_vocab, n_embed),
                                        dtype=jnp.float32)
    # PyTorch init is zeros for position_embedding; use small random values so
    # the add is actually exercised, deterministically seeded.
    position_embedding = 0.01 * jax.random.normal(
        k_pos, (n_tokens, n_embed), dtype=jnp.float32)

    out = clip_embedding_forward(tokens, token_embedding, position_embedding)
    out = jax.block_until_ready(out)

    # Correctness check against plain-JAX reference (gather + broadcast add).
    ref = token_embedding[tokens] + position_embedding[None, :, :]
    assert out.shape == (batch, n_tokens, n_embed)
    assert jnp.allclose(out, ref, atol=1e-6, rtol=1e-6)

    print("KERNEL_OK")
</pallas_src>

<mosaic_0001>
module attributes {stable_mosaic.version = 11 : i64} {
  func.func @_embed_kernel(%arg0: i32, %arg1: i32, %arg2: memref<16xi32, #tpu.memory_space<smem>>, %arg3: memref<64x128xf32, #tpu.memory_space<vmem>>, %arg4: memref<8x128xf32, #tpu.memory_space<vmem>>, %arg5: memref<1x8x128xf32, #tpu.memory_space<vmem>>) attributes {dimension_semantics = [#tpu.dimension_semantics<parallel>, #tpu.dimension_semantics<parallel>], iteration_bounds = array<i64: 2, 1>, scalar_prefetch = 1 : i64, scratch_operands = 0 : i64, tpu.core_type = #tpu.core_type<tc>, window_params = [{pipeline_mode = #tpu.pipeline_mode<synchronous>, transform_indices = @transform_0, window_bounds = array<i64: 64, 128>}, {transform_indices = @transform_1, window_bounds = array<i64: 8, 128>}, {transform_indices = @transform_2, window_bounds = array<i64: 1, 8, 128>}]} {
    %c8_i32 = arith.constant 8 : i32
    %0 = arith.muli %arg0, %c8_i32 : i32
    %c8_i32_0 = arith.constant 8 : i32
    %1 = arith.muli %arg1, %c8_i32_0 : i32
    %2 = arith.addi %0, %1 : i32
    %c0_i32 = arith.constant 0 : i32
    %3 = tpu.assume_multiple %c0_i32, 8 : i32
    %4 = arith.addi %2, %3 : i32
    %c0_i32_1 = arith.constant 0 : i32
    %5 = arith.addi %4, %c0_i32_1 : i32
    %6 = arith.index_cast %5 : i32 to index
    %7 = memref.load %arg2[%6] : memref<16xi32, #tpu.memory_space<smem>>
    %8 = arith.index_cast %7 : i32 to index
    %c0 = arith.constant 0 : index
    %9 = vector.load %arg3[%8, %c0] : memref<64x128xf32, #tpu.memory_space<vmem>>, vector<1x128xf32>
    %10 = arith.addi %2, %3 : i32
    %c1_i32 = arith.constant 1 : i32
    %11 = arith.addi %10, %c1_i32 : i32
    %12 = arith.index_cast %11 : i32 to index
    %13 = memref.load %arg2[%12] : memref<16xi32, #tpu.memory_space<smem>>
    %14 = arith.index_cast %13 : i32 to index
    %c0_2 = arith.constant 0 : index
    %15 = vector.load %arg3[%14, %c0_2] : memref<64x128xf32, #tpu.memory_space<vmem>>, vector<1x128xf32>
    %16 = arith.addi %2, %3 : i32
    %c2_i32 = arith.constant 2 : i32
    %17 = arith.addi %16, %c2_i32 : i32
    %18 = arith.index_cast %17 : i32 to index
    %19 = memref.load %arg2[%18] : memref<16xi32, #tpu.memory_space<smem>>
    %20 = arith.index_cast %19 : i32 to index
    %c0_3 = arith.constant 0 : index
    %21 = vector.load %arg3[%20, %c0_3] : memref<64x128xf32, #tpu.memory_space<vmem>>, vector<1x128xf32>
    %22 = arith.addi %2, %3 : i32
    %c3_i32 = arith.constant 3 : i32
    %23 = arith.addi %22, %c3_i32 : i32
    %24 = arith.index_cast %23 : i32 to index
    %25 = memref.load %arg2[%24] : memref<16xi32, #tpu.memory_space<smem>>
    %26 = arith.index_cast %25 : i32 to index
    %c0_4 = arith.constant 0 : index
    %27 = vector.load %arg3[%26, %c0_4] : memref<64x128xf32, #tpu.memory_space<vmem>>, vector<1x128xf32>
    %28 = arith.addi %2, %3 : i32
    %c4_i32 = arith.constant 4 : i32
    %29 = arith.addi %28, %c4_i32 : i32
    %30 = arith.index_cast %29 : i32 to index
    %31 = memref.load %arg2[%30] : memref<16xi32, #tpu.memory_space<smem>>
    %32 = arith.index_cast %31 : i32 to index
    %c0_5 = arith.constant 0 : index
    %33 = vector.load %arg3[%32, %c0_5] : memref<64x128xf32, #tpu.memory_space<vmem>>, vector<1x128xf32>
    %34 = arith.addi %2, %3 : i32
    %c5_i32 = arith.constant 5 : i32
    %35 = arith.addi %34, %c5_i32 : i32
    %36 = arith.index_cast %35 : i32 to index
    %37 = memref.load %arg2[%36] : memref<16xi32, #tpu.memory_space<smem>>
    %38 = arith.index_cast %37 : i32 to index
    %c0_6 = arith.constant 0 : index
    %39 = vector.load %arg3[%38, %c0_6] : memref<64x128xf32, #tpu.memory_space<vmem>>, vector<1x128xf32>
    %40 = arith.addi %2, %3 : i32
    %c6_i32 = arith.constant 6 : i32
    %41 = arith.addi %40, %c6_i32 : i32
    %42 = arith.index_cast %41 : i32 to index
    %43 = memref.load %arg2[%42] : memref<16xi32, #tpu.memory_space<smem>>
    %44 = arith.index_cast %43 : i32 to index
    %c0_7 = arith.constant 0 : index
    %45 = vector.load %arg3[%44, %c0_7] : memref<64x128xf32, #tpu.memory_space<vmem>>, vector<1x128xf32>
    %46 = arith.addi %2, %3 : i32
    %c7_i32 = arith.constant 7 : i32
    %47 = arith.addi %46, %c7_i32 : i32
    %48 = arith.index_cast %47 : i32 to index
    %49 = memref.load %arg2[%48] : memref<16xi32, #tpu.memory_space<smem>>
    %50 = arith.index_cast %49 : i32 to index
    %c0_8 = arith.constant 0 : index
    %51 = vector.load %arg3[%50, %c0_8] : memref<64x128xf32, #tpu.memory_space<vmem>>, vector<1x128xf32>
    %52 = tpu.concatenate %9, %15, %21, %27, %33, %39, %45, %51 in 0 : vector<1x128xf32>, vector<1x128xf32>, vector<1x128xf32>, vector<1x128xf32>, vector<1x128xf32>, vector<1x128xf32>, vector<1x128xf32>, vector<1x128xf32> -> vector<8x128xf32>
    %53 = arith.index_cast %3 : i32 to index
    %c0_9 = arith.constant 0 : index
    %54 = vector.load %arg4[%53, %c0_9] : memref<8x128xf32, #tpu.memory_space<vmem>>, vector<8x128xf32>
    %55 = arith.addf %52, %54 : vector<8x128xf32>
    %c0_10 = arith.constant 0 : index
    %56 = arith.index_cast %3 : i32 to index
    %c0_11 = arith.constant 0 : index
    %57 = vector.load %arg5[%c0_10, %56, %c0_11] : memref<1x8x128xf32, #tpu.memory_space<vmem>>, vector<1x8x128xf32>
    %58 = vector.shape_cast %57 : vector<1x8x128xf32> to vector<8x128xf32>
    %59 = vector.shape_cast %55 : vector<8x128xf32> to vector<1x8x128xf32>
    tpu.vector_store %arg5[%c0_10, %56, %c0_11], %59 {strides = array<i32>} : memref<1x8x128xf32, #tpu.memory_space<vmem>>, vector<1x8x128xf32>,
    return
  }
  func.func @transform_0(%arg0: i32, %arg1: i32, %arg2: memref<16xi32, #tpu.memory_space<smem>>) -> (i32, i32) {
    %c0_i32 = arith.constant 0 : i32
    %c0_i32_0 = arith.constant 0 : i32
    %c0_i32_1 = arith.constant 0 : i32
    return %c0_i32, %c0_i32_0 : i32, i32
  }
  func.func @transform_1(%arg0: i32, %arg1: i32, %arg2: memref<16xi32, #tpu.memory_space<smem>>) -> (i32, i32) {
    %c0_i32 = arith.constant 0 : i32
    %c0_i32_0 = arith.constant 0 : i32
    return %arg1, %c0_i32 : i32, i32
  }
  func.func @transform_2(%arg0: i32, %arg1: i32, %arg2: memref<16xi32, #tpu.memory_space<smem>>) -> (i32, i32, i32) {
    %c0_i32 = arith.constant 0 : i32
    %c0_i32_0 = arith.constant 0 : i32
    return %arg0, %arg1, %c0_i32 : i32, i32, i32
  }
}

</mosaic_0001>

<llo_original>
// kernel: tpu_custom_call.1
$region0: #{tpu_custom_call.1}
  #allocation0 [shape = 'u32[]', space=smem, size = 0x4, offset = 0x4, fixed_abs, tag = 'smem constant byte address 0x4 - core index']
  #allocation1 [shape = 'u32[144,128]{1,0:T(1,128)}', space=vmem, size = 0x12000, scoped, tag = 'internal scratch']
  #allocation2 [shape = 's32[1]{0}', space=sflag, size = 0x4, scoped, tag = 'scoped memory for tpu_custom_call.1']
  #allocation3 [shape = 'u8[512]{0}', space=smem, size = 0x200, scoped, tag = 'prefetched SMEM operand 0']
  %s0 = inlined_call_operand.hbm [shape: s32[16], index: 0, kind: input, shape index: {}]
  %s1 = inlined_call_operand.hbm [shape: f32[64,128], index: 1, kind: input, shape index: {}]
  %s2 = inlined_call_operand.hbm [shape: f32[8,128], index: 2, kind: input, shape index: {}]
  %s3 = inlined_call_operand.hbm [shape: f32[2,8,128], index: 3, kind: output, shape index: {}]
  %s4 = sld [smem:[#allocation0]]
  $region49: #{tpu_custom_call.1} parent=0
    _
  %s6 = ssub.s32 1, %s4
  %s7 = scalar_select 0, %s6, %s4
  %9 = dma.hbm_to_smem %s0, 16, [#allocation3], [#allocation2]
  %10 = dma.done [#allocation2], 16
  %11 = sfence
  $region1: #{tpu_custom_call.1} parent=0
    #allocation4 [shape = 'u8[32768]{0}', space=vmem, size = 0x8000, scoped, tag = 'input window, operand 1, single buffered']
    #allocation5 [shape = 's32[2]{0}', space=sflag, size = 0x8, scoped, tag = 'scoped memory for tpu_custom_call.1']
    #allocation6 [shape = 's32[2]{0}', space=sflag, size = 0x8, scoped, tag = 'scoped memory for tpu_custom_call.1']
    #allocation7 [shape = 'u8[4096]{0}', space=vmem, size = 0x1000, scoped, tag = 'input window, operand 2, single buffered']
    #allocation8 [shape = 's32[1]{0}', space=sflag, size = 0x4, scoped, tag = 'scoped memory for tpu_custom_call.1']
    #allocation9 [shape = 'u8[8192]{0}', space=vmem, size = 0x2000, scoped, tag = 'output window, operand 0']
    %12 = vsyncpa [#allocation5], 0
    %13 = vsyncpa [#allocation8], 0
    %14 = vsyncpa [#allocation6], 0
    %s15 = scalar_lea.sflag [#allocation6], 1
    %16 = vsyncpa %s15, 0
    loop: start=0, step=1, limit=4
    $region2: #{tpu_custom_call.1} parent=1 // loop_pre_header
      _
    $region3: #{tpu_custom_call.1} parent=1 // loop_header
      %s18 = sphi 0, %s22
      %p19 = scmp.ge.s32.totalorder %s18, 4
      %s25 = sphi 0, %s37
      %s26 = sphi 0, %s33
      %s27 = sphi 0, %s25
      %s28 = sphi 0, %s26
      %s29 = sphi 0, %s27
      %s30 = sphi 0, %s28
      %s38 = sphi 0, %s38
      %s40 = sphi 0, %s38
      %s41 = sphi 0, %s40
      %s55 = sphi 0, %s41
      %s61 = sphi 0, %s63
      %s64 = sphi 0, %s61
      %s65 = sphi 0, %s64
      %s81 = sphi 0, %s65
      %s89 = sphi 0, %s91
      %s92 = sphi 0, %s89
      %s93 = sphi 0, %s92
      %s109 = sphi 0, %s93
    $region4: #{tpu_custom_call.1} parent=1 // loop_header_branch
      %21 = sbr.rel (%p19) target = $region8
    $region5: #{tpu_custom_call.1} parent=1 // loop_body
      %s23 = ssub.s32 %s18, 1
      %s24 = ssub.s32 %s18, 2
      %s31 = sadd.s32 1, %s26
      %p32 = scmp.ge.s32.totalorder %s31, 1
      %s33 = scalar_select %p32, 0, %s31
      %s34 = sadd.s32 1, %s25
      %s35 = scalar_select %p32, %s34, %s25
      %p36 = scmp.ge.s32.totalorder %s35, 2
      %s37 = scalar_select %p36, 0, %s35
      %s39 = sadd.s32 %s38, 1
      %p42 = scmp.eq.s32.totalorder %s18, 1
      %p43 = scmp.ne.s32.totalorder %s38, %s40
      %p44 = scmp.eq.s32.totalorder %s18, 0
      %p45 = por %p43, %p44
      %p46 = scmp.ne.s32.totalorder %s38, %s40
      %p47 = scmp.eq.s32.totalorder %s23, 1
      %p48 = por %p46, %p47
      %p49 = scmp.ne.s32.totalorder %s40, %s41
      %p50 = scmp.eq.s32.totalorder %s23, 0
      %p51 = por %p49, %p50
      %p52 = scmp.ne.s32.totalorder %s40, %s41
      %p53 = scmp.eq.s32.totalorder %s24, 1
      %p54 = por %p52, %p53
      %p56 = scmp.ne.s32.totalorder %s41, %s55
      %p57 = scmp.eq.s32.totalorder %s24, 0
      %p58 = por %p56, %p57
      %s59 = ssub.s32 %s26, %s33
      %p60 = scmp.eq.s32.totalorder %s59, 0
      %s62 = sadd.s32 %s61, 1
      %s63 = scalar_select %p60, %s61, %s62
      %p66 = pneg %p60
      %p67 = scmp.eq.s32.totalorder %s18, 1
      %p68 = por %p66, %p67
      %p69 = scmp.ne.s32.totalorder %s61, %s64
      %p70 = scmp.eq.s32.totalorder %s18, 0
      %p71 = por %p69, %p70
      %p72 = scmp.ne.s32.totalorder %s61, %s64
      %p73 = scmp.eq.s32.totalorder %s23, 1
      %p74 = por %p72, %p73
      %p75 = scmp.ne.s32.totalorder %s64, %s65
      %p76 = scmp.eq.s32.totalorder %s23, 0
      %p77 = por %p75, %p76
      %p78 = scmp.ne.s32.totalorder %s64, %s65
      %p79 = scmp.eq.s32.totalorder %s24, 1
      %p80 = por %p78, %p79
      %p82 = scmp.ne.s32.totalorder %s65, %s81
      %p83 = scmp.eq.s32.totalorder %s24, 0
      %p84 = por %p82, %p83
      %s85 = ssub.s32 %s25, %s37
      %s86 = ssub.s32 %s26, %s33
      %s87 = sor.u32 %s85, %s86
      %p88 = scmp.eq.s32.totalorder %s87, 0
      %s90 = sadd.s32 %s89, 1
      %s91 = scalar_select %p88, %s89, %s90
      %p94 = pneg %p88
      %p95 = scmp.eq.s32.totalorder %s18, 1
      %p96 = por %p94, %p95
      %p97 = scmp.ne.s32.totalorder %s89, %s92
      %p98 = scmp.eq.s32.totalorder %s18, 0
      %p99 = por %p97, %p98
      %p100 = scmp.ne.s32.totalorder %s89, %s92
      %p101 = scmp.eq.s32.totalorder %s23, 1
      %p102 = por %p100, %p101
      %p103 = scmp.ne.s32.totalorder %s92, %s93
      %p104 = scmp.eq.s32.totalorder %s23, 0
      %p105 = por %p103, %p104
      %p106 = scmp.ne.s32.totalorder %s92, %s93
      %p107 = scmp.eq.s32.totalorder %s24, 1
      %p108 = por %p106, %p107
      %p110 = scmp.ne.s32.totalorder %s93, %s109
      %p111 = scmp.eq.s32.totalorder %s24, 0
      %p112 = por %p110, %p111
      %p113 = scmp.le.s32.totalorder 1, %s18
      %p114 = scmp.lt.s32.totalorder %s18, 3
      %p115 = pnand %p113, %p114
      %p116 = pneg %p115
      // Predicated region
      $region9: #{tpu_custom_call.1} parent=5 // pred_check
        _
      $region10: #{tpu_custom_call.1} parent=5 // pred_check_branch
        %118 = sbr.rel (%p115) target = $region12
      $region11: #{tpu_custom_call.1} parent=5 // pred_region
        %s119 = ssub.s32 %s18, 1
        // Predicated region
        $region13: #{tpu_custom_call.1} parent=11 // pred_check
          %p120 = pneg %p51
        $region14: #{tpu_custom_call.1} parent=11 // pred_check_branch
          %122 = sbr.rel (%p120) target = $region16
        $region15: #{tpu_custom_call.1} parent=11 // pred_region
          %s124 = ssub.s32 1024, 1024
          %125 = vsyncadd [#allocation5], %s124
          %s126 = sshll.u32 [#allocation4], 4
          %s127 = int_to_ptr.vmem [resolvable:$true] %s126
          %132 = dma.hbm_to_vmem [thread:$0]  %s1, 1024, %s127, [#allocation5], 128, 128, 8
        $region16: #{tpu_custom_call.1} parent=11 // pred_fallthru
          _
        // Predicated region
        $region17: #{tpu_custom_call.1} parent=11 // pred_check
          %p133 = pneg %p77
        $region18: #{tpu_custom_call.1} parent=11 // pred_check_branch
          %135 = sbr.rel (%p133) target = $region20
        $region19: #{tpu_custom_call.1} parent=11 // pred_region
          %s137 = ssub.s32 128, 128
          %138 = vsyncadd [#allocation8], %s137
          %s139 = smul.addr %s28, 128
          %s140 = scalar_lea.hbm %s2, %s139
          %s142 = sshll.u32 [#allocation7], 4
          %s143 = int_to_ptr.vmem [resolvable:$true] %s142
          %145 = dma.hbm_to_vmem [thread:$0]  %s140, 128, %s143, [#allocation8]
        $region20: #{tpu_custom_call.1} parent=11 // pred_fallthru
          _
      $region12: #{tpu_custom_call.1} parent=5 // pred_fallthru
        _
      %p146 = scmp.lt.s32.totalorder %s18, 2
      // Predicated region
      $region21: #{tpu_custom_call.1} parent=5 // pred_check
        %p147 = pneg %p146
      $region22: #{tpu_custom_call.1} parent=5 // pred_check_branch
        %149 = sbr.rel (%p147) target = $region24
      $region23: #{tpu_custom_call.1} parent=5 // pred_region
        _
      $region24: #{tpu_custom_call.1} parent=5 // pred_fallthru
        _
      %p150 = scmp.le.s32.totalorder 1, %s18
      %p151 = scmp.lt.s32.totalorder %s18, 3
      %p152 = pnand %p150, %p151
      %p153 = pneg %p152
      // Predicated region
      $region25: #{tpu_custom_call.1} parent=5 // pred_check
        _
      $region26: #{tpu_custom_call.1} parent=5 // pred_check_branch
        %155 = sbr.rel (%p152) target = $region28
      $region27: #{tpu_custom_call.1} parent=5 // pred_region
        %s156 = ssub.s32 %s18, 1
        // Predicated region
        $region29: #{tpu_custom_call.1} parent=27 // pred_check
          %p157 = pneg %p51
        $region30: #{tpu_custom_call.1} parent=27 // pred_check_branch
          %159 = sbr.rel (%p157) target = $region32
        $region31: #{tpu_custom_call.1} parent=27 // pred_region
          %160 = dma.done [#allocation5], 1024
        $region32: #{tpu_custom_call.1} parent=27 // pred_fallthru
          _
        // Predicated region
        $region33: #{tpu_custom_call.1} parent=27 // pred_check
          %p161 = pneg %p77
        $region34: #{tpu_custom_call.1} parent=27 // pred_check_branch
          %163 = sbr.rel (%p161) target = $region36
        $region35: #{tpu_custom_call.1} parent=27 // pred_region
          %164 = dma.done [#allocation8], 128
        $region36: #{tpu_custom_call.1} parent=27 // pred_fallthru
          _
        %p165 = pneg %p51
        %p166 = pneg %p48
        %p167 = pneg %p77
        %p168 = pneg %p74
        %p169 = pneg %p105
        %p170 = pneg %p102
        %s171 = sand.u32 %s92, 1
        %s172 = scalar_lea.sflag [#allocation6], %s171
        %s173 = sand.u32 %s92, 1
        %s174 = smul.addr %s173, 8
        %s175 = scalar_lea.vmem [#allocation9], %s174
        %s176 = smul.u32 %s27, 8
        %s177 = smul.u32 %s28, 8
        %s178 = sadd.s32 %s176, %s177
        %s179 = sadd.s32 %s178, 0
        %s180 = sld [smem:[#allocation3 + %s179]]
        %s181 = scalar_lea.vmem [#allocation4], %s180
        %v182 = vld [vmem:[%s181] sm:$0x1]
        %s183 = sadd.s32 %s179, 1
        %s184 = sld [smem:[#allocation3 + %s183]]
        %s185 = scalar_lea.vmem [#allocation4], %s184
        %v186 = vld [vmem:[%s185] sm:$0x1]
        %s187 = sadd.s32 %s179, 2
        %s188 = sld [smem:[#allocation3 + %s187]]
        %s189 = scalar_lea.vmem [#allocation4], %s188
        %v190 = vld [vmem:[%s189] sm:$0x1]
        %s191 = sadd.s32 %s179, 3
        %s192 = sld [smem:[#allocation3 + %s191]]
        %s193 = scalar_lea.vmem [#allocation4], %s192
        %v194 = vld [vmem:[%s193] sm:$0x1]
        %s195 = sadd.s32 %s179, 4
        %s196 = sld [smem:[#allocation3 + %s195]]
        %s197 = scalar_lea.vmem [#allocation4], %s196
        %v198 = vld [vmem:[%s197] sm:$0x1]
        %s199 = sadd.s32 %s179, 5
        %s200 = sld [smem:[#allocation3 + %s199]]
        %s201 = scalar_lea.vmem [#allocation4], %s200
        %v202 = vld [vmem:[%s201] sm:$0x1]
        %s203 = sadd.s32 %s179, 6
        %s204 = sld [smem:[#allocation3 + %s203]]
        %s205 = scalar_lea.vmem [#allocation4], %s204
        %v206 = vld [vmem:[%s205] sm:$0x1]
        %s207 = sadd.s32 %s179, 7
        %s208 = sld [smem:[#allocation3 + %s207]]
        %s209 = scalar_lea.vmem [#allocation4], %s208
        %v210 = vld [vmem:[%s209] sm:$0x1]
        %v212 = vrot.slane %v186, 7
        %v215 = vrot.slane %v190, 6
        %v218 = vrot.slane %v194, 5
        %v221 = vrot.slane %v198, 4
        %v224 = vrot.slane %v202, 3
        %v227 = vrot.slane %v206, 2
        %v230 = vrot.slane %v210, 1
        %vm232 = vcmask 1040384
        %v233 = vsel %vm232, %v182, %v212
        %vm234 = vcmask 1041408
        %v235 = vsel %vm234, %v233, %v215
        %vm236 = vcmask 1042432
        %v237 = vsel %vm236, %v235, %v218
        %vm238 = vcmask 1043456
        %v239 = vsel %vm238, %v237, %v221
        %vm240 = vcmask 1044480
        %v241 = vsel %vm240, %v239, %v224
        %vm242 = vcmask 1045504
        %v243 = vsel %vm242, %v241, %v227
        %vm244 = vcmask 1046528
        %v245 = vsel %vm244, %v243, %v230
        %v246 = vld [vmem:[#allocation7] sm:$0xff]
        %v247 = vadd.f32 %v245, %v246
        %248 = vst [vmem:[%s175] sm:$0xff] %v247
        %s249 = sand.u32 %s92, 1
        %s250 = scalar_lea.sflag [#allocation6], %s249
        %s251 = sand.u32 %s92, 1
        %s252 = smul.addr %s251, 8
        %s253 = scalar_lea.vmem [#allocation9], %s252
        // Predicated region
        $region37: #{tpu_custom_call.1} parent=27 // pred_check
          %p254 = pneg %p102
        $region38: #{tpu_custom_call.1} parent=27 // pred_check_branch
          %256 = sbr.rel (%p254) target = $region40
        $region39: #{tpu_custom_call.1} parent=27 // pred_region
          %s258 = ssub.s32 128, 128
          %259 = vsyncadd %s250, %s258
          %s260 = sadd.s32 %s28, %s27
          %s261 = smul.addr %s260, 128
          %s262 = scalar_lea.hbm %s3, %s261
          %s264 = sshll.u32 %s253, 4
          %s265 = int_to_ptr.vmem [resolvable:$true] %s264
          %267 = dma.vmem_to_hbm [thread:$0]  %s265, 128, %s262, %s250
        $region40: #{tpu_custom_call.1} parent=27 // pred_fallthru
          _
      $region28: #{tpu_custom_call.1} parent=5 // pred_fallthru
        _
      %p268 = scmp.le.s32.totalorder 2, %s18
      // Predicated region
      $region41: #{tpu_custom_call.1} parent=5 // pred_check
        %p269 = pneg %p268
      $region42: #{tpu_custom_call.1} parent=5 // pred_check_branch
        %271 = sbr.rel (%p269) target = $region44
      $region43: #{tpu_custom_call.1} parent=5 // pred_region
        %s272 = ssub.s32 %s18, 2
        // Predicated region
        $region45: #{tpu_custom_call.1} parent=43 // pred_check
          %p273 = pneg %p108
        $region46: #{tpu_custom_call.1} parent=43 // pred_check_branch
          %275 = sbr.rel (%p273) target = $region48
        $region47: #{tpu_custom_call.1} parent=43 // pred_region
          %s276 = sand.u32 %s93, 1
          %s277 = scalar_lea.sflag [#allocation6], %s276
          %s278 = sand.u32 %s93, 1
          %s279 = smul.addr %s278, 8
          %s280 = scalar_lea.vmem [#allocation9], %s279
          %281 = dma.done %s277, 128
        $region48: #{tpu_custom_call.1} parent=43 // pred_fallthru
          _
      $region44: #{tpu_custom_call.1} parent=5 // pred_fallthru
        _
    $region6: #{tpu_custom_call.1} parent=1 // loop_footer
      %s22 = sadd.s32 1, %s18
    $region7: #{tpu_custom_call.1} parent=1 // loop_footer_branch
      %17 = sbr.rel target = $region3
    $region8: #{tpu_custom_call.1} parent=1 // loop_exit
      _
    %282 = vsyncpa [#allocation5], 1
    %s283 = scalar_lea.sflag [#allocation5], 1
    %284 = vsyncpa %s283, 1
    %285 = vsyncpa [#allocation8], 1
    %286 = vsyncpa [#allocation6], 1
    %s287 = scalar_lea.sflag [#allocation6], 1
    %288 = vsyncpa %s287, 1

</llo_original>
